<compile_context>
chip_gen: v7x
topology: tpu7x:2x2x1
jax: 0.10.0
libtpu: 0.0.40
codegen_flags: <defaults>
</compile_context>

<pallas_src>
import functools

import jax
import jax.numpy as jnp
from jax.experimental import pallas as pl
from jax.experimental.pallas import tpu as pltpu


def _round_up(x, m):
    return (x + m - 1) // m * m


def embedding_cw_kernel(
    w_emb_ref,       # (TN, Dw)                 compute_dtype
    c_emb_ref,       # (TN, CL*Dc)              compute_dtype, lane-dense
    band_w_ref,      # (CL*Dc, L_out*Cout)      zero-banded im2col conv weight
    proj_ww_ref,     # (Dw, H)                  word half of proj
    proj_wc_ref,     # (Cout, H)                char half of proj
    proj_b_ref,      # (1, H)  f32              conv_b folded through proj_wc
    hwy0_w_ref,      # (H, 2H) = [gate | transform]
    hwy1_w_ref,      # (H, 2H)
    hwy_b_ref,       # (2, 2H) f32              per-layer [gate|transform] bias
    out_ref,         # (TN, H) f32
    *, cout, l_out,
):
    H = out_ref.shape[-1]

    # --- char CNN + max-pool: ONE banded matmul, then a lane-group max ------
    # band column group t holds conv_w shifted down by t*Dc rows, so a single
    # (TN, CL*Dc) @ (CL*Dc, L_out*Cout) matmul yields all L_out conv windows
    # side by side; MaxPool1d over time == max over the L_out lane groups.
    conv_all = jnp.dot(c_emb_ref[...], band_w_ref[...],
                       preferred_element_type=jnp.float32)      # (TN, L_out*Cout) f32

    n_cols = l_out * cout
    if n_cols % 128 == 0 and 128 % cout == 0:
        # 1) fold the vreg-aligned 128-lane chunks (free slices, VPU maxes)
        m = conv_all[:, 0:128]
        for off in range(128, n_cols, 128):
            m = jnp.maximum(m, conv_all[:, off:off + 128])
        # 2) fold the cout-wide groups inside one vreg with XLU rolls; each fold
        #    leaves a lane-periodic pattern, so the result is roll-direction
        #    agnostic and lanes [:cout] always hold the full max.
        width = 128
        while width > cout:
            width //= 2
            m = jnp.maximum(m, pltpu.roll(m, shift=128 - width, axis=1))
        conv_max = m[:, :cout]                                   # (TN, Cout) f32
    else:
        # generic fallback for odd (cout, l_out) configurations
        conv_max = conv_all[:, 0:cout]
        for t in range(1, l_out):
            conv_max = jnp.maximum(conv_max, conv_all[:, t * cout:(t + 1) * cout])

    # --- projection, split to avoid the 96-lane concat/relayout -------------
    # TODO(synk): dropout omitted (inference / eval mode -> identity).
    x = jnp.dot(w_emb_ref[...], proj_ww_ref[...],
                preferred_element_type=jnp.float32)
    x = x + jnp.dot(conv_max.astype(proj_wc_ref.dtype), proj_wc_ref[...],
                    preferred_element_type=jnp.float32)
    x = x + proj_b_ref[...]                    # conv_b @ proj_wc folded here (f32)

    # --- 2-layer highway: one fused 128-wide [gate|transform] matmul each ---
    for idx, hw_ref in enumerate((hwy0_w_ref, hwy1_w_ref)):
        gt = jnp.dot(x.astype(hw_ref.dtype), hw_ref[...],
                     preferred_element_type=jnp.float32)
        gt = gt + hwy_b_ref[idx:idx + 1, :]                      # (1, 2H) f32
        g = jax.nn.sigmoid(gt[:, :H])
        t = jnp.maximum(gt[:, H:], 0.0)
        x = g * t + (1.0 - g) * x

    out_ref[...] = x.astype(out_ref.dtype)


def embedding_cw_forward(w_idxs, c_idxs, params, *, tn=None,
                         compute_dtype=jnp.bfloat16):
    """Pallas implementation of Embedding_CW.forward (eval mode).

    compute_dtype: dtype of the HBM streams / MXU operands. Default bf16 halves
    HBM + VMEM traffic (v5e/v6e/v7x MXUs take bf16 natively with f32
    accumulation); the VPU epilogue (sigmoid/relu/highway blend) stays f32.
    """
    word_vecs = params["word_vectors"]     # (Vw, Dw)
    char_vecs = params["char_vectors"]     # (Vc, Dc)
    conv_w = params["conv_w"]              # (Cout, Dc, K)  (PyTorch Conv1d layout)
    conv_b = params["conv_b"]              # (Cout,)
    proj_w = params["proj_w"]              # (Dw+Cout, H)
    hwy = params["hwy"]                    # list of dicts per layer

    B, S = w_idxs.shape
    char_limit = c_idxs.shape[2]
    Dw = word_vecs.shape[1]
    Dc = char_vecs.shape[1]
    Cout, _, K = conv_w.shape
    H = proj_w.shape[1]
    l_out = char_limit - K + 1
    N = B * S

    itemsize = jnp.dtype(compute_dtype).itemsize
    align = 16 if itemsize < 4 else 8      # sub-32-bit dtypes pack 2x along sublanes

    # Token tile: big enough to amortize the ~0.35us/step pipeline overhead,
    # capped so the grid keeps >=2 steps (v7x shards the "parallel" axis across
    # its 2 TensorCores), and aligned for the dtype's sublane packing.
    if tn is None:
        tn = 2048 if itemsize < 4 else 1024
    half = _round_up(max((N + 1) // 2, 1), align)
    tn = max(align, min(_round_up(tn, align), half))
    n_pad = _round_up(N, tn)

    w_flat = w_idxs.reshape(N)
    c_flat = c_idxs.reshape(N, char_limit)
    if n_pad != N:
        # Padding tokens use index 0 -> finite outputs, sliced off below.
        w_flat = jnp.pad(w_flat, (0, n_pad - N))
        c_flat = jnp.pad(c_flat, ((0, n_pad - N), (0, 0)))

    # Gathers stay in XLA (glue). The kernel consumes the raw embeddings
    # directly; NO (N, L_out, K*Dc) im2col tensor is ever written to HBM.
    emb_w = word_vecs[w_flat].astype(compute_dtype)                 # (Np, Dw)
    emb_c = char_vecs[c_flat].reshape(n_pad, char_limit * Dc)       # (Np, CL*Dc)
    emb_c = emb_c.astype(compute_dtype)

    # Banded im2col conv weight: W_band[t*Dc + k*Dc + ci, t*Cout + co] = conv_w[co, ci, k].
    conv_w_flat = jnp.transpose(conv_w, (2, 1, 0)).reshape(K * Dc, Cout)
    band = jnp.zeros((char_limit * Dc, l_out * Cout), jnp.float32)
    for t in range(l_out):
        band = band.at[t * Dc:t * Dc + K * Dc,
                       t * Cout:(t + 1) * Cout].set(conv_w_flat)
    band = band.astype(compute_dtype)

    proj_ww = proj_w[:Dw].astype(compute_dtype)                     # (Dw, H)
    proj_wc = proj_w[Dw:].astype(compute_dtype)                     # (Cout, H)
    # conv bias is window-invariant -> fold it through the char half of proj.
    proj_b = (conv_b @ proj_w[Dw:]).reshape(1, H).astype(jnp.float32)

    # Fuse each highway layer's gate/transform into one (H, 2H) matmul; stack
    # both bias rows into a single (2, 2H) f32 block.
    hwy_w = [jnp.concatenate([l["g_w"], l["t_w"]], axis=1).astype(compute_dtype)
             for l in hwy]
    hwy_b = jnp.stack([jnp.concatenate([l["g_b"], l["t_b"]]) for l in hwy]
                      ).astype(jnp.float32)                         # (2, 2H)

    # Explicit VMEM budget: double-buffered token streams + revisited weights.
    stream_bytes = 2 * tn * (Dw + char_limit * Dc) * itemsize       # inputs
    stream_bytes += 2 * tn * H * 4                                  # f32 output
    weight_bytes = 2 * itemsize * (band.size + proj_ww.size + proj_wc.size
                                   + 2 * H * 2 * H)
    weight_bytes += 2 * 4 * (proj_b.size + hwy_b.size)
    vmem_limit = min(int(2 * (stream_bytes + weight_bytes)) + (4 << 20), 48 << 20)

    grid = (n_pad // tn,)

    def tok_map(i):
        return (i, 0)

    def const2(i):
        return (0, 0)

    kernel = functools.partial(embedding_cw_kernel, cout=Cout, l_out=l_out)

    out = pl.pallas_call(
        kernel,
        out_shape=jax.ShapeDtypeStruct((n_pad, H), jnp.float32),
        grid_spec=pltpu.PrefetchScalarGridSpec(
            num_scalar_prefetch=0,
            grid=grid,
            in_specs=[
                pl.BlockSpec((tn, Dw), tok_map),
                pl.BlockSpec((tn, char_limit * Dc), tok_map),
                # constant index maps -> fetched once and revisited across the grid
                pl.BlockSpec((char_limit * Dc, l_out * Cout), const2),
                pl.BlockSpec((Dw, H), const2),
                pl.BlockSpec((Cout, H), const2),
                pl.BlockSpec((1, H), const2),
                pl.BlockSpec((H, 2 * H), const2),
                pl.BlockSpec((H, 2 * H), const2),
                pl.BlockSpec((2, 2 * H), const2),
            ],
            out_specs=pl.BlockSpec((tn, H), tok_map),
        ),
        compiler_params=pltpu.CompilerParams(
            dimension_semantics=("parallel",),
            vmem_limit_bytes=vmem_limit),
    )(
        emb_w, emb_c, band, proj_ww, proj_wc, proj_b,
        hwy_w[0], hwy_w[1], hwy_b,
    )
    return out[:N].reshape(B, S, H)


def embedding_cw_reference(w_idxs, c_idxs, params):
    """Pure-JAX reference mirroring the PyTorch forward (eval mode)."""
    word_vecs = params["word_vectors"]
    char_vecs = params["char_vectors"]
    conv_w, conv_b = params["conv_w"], params["conv_b"]
    proj_w = params["proj_w"]
    hwy = params["hwy"]

    B, S = w_idxs.shape
    char_limit = c_idxs.shape[2]
    Dc = char_vecs.shape[1]
    Cout, _, K = conv_w.shape
    L_out = char_limit - K + 1

    emb_w = word_vecs[w_idxs]                              # (B, S, Dw)
    emb_c = char_vecs[c_idxs].reshape(B * S, char_limit, Dc)
    # Conv1d: out[n, co, t] = sum_{ci,k} W[co,ci,k] * emb_c[n, t+k, ci] + b[co]
    outs = []
    for t in range(L_out):
        window = emb_c[:, t:t + K, :]                      # (N, K, Dc)
        outs.append(jnp.einsum("nkc,ock->no", window, conv_w) + conv_b)
    conv = jnp.stack(outs, axis=1)                         # (N, L_out, Cout)
    conv_max = jnp.max(conv, axis=1).reshape(B, S, Cout)

    emb = jnp.concatenate([emb_w, conv_max], axis=2)
    x = emb @ proj_w
    for layer in hwy:
        g = jax.nn.sigmoid(x @ layer["g_w"] + layer["g_b"])
        t = jax.nn.relu(x @ layer["t_w"] + layer["t_b"])
        x = g * t + (1.0 - g) * x
    return x


def init_params(key, *, vocab_w=100, vocab_c=50, dw=64, dc=16,
                char_cnn_output_size=32, hidden_size=64, kernel_size=5):
    ks = jax.random.split(key, 12)
    params = {
        "word_vectors": jax.random.normal(ks[0], (vocab_w, dw), jnp.float32),
        "char_vectors": jax.random.normal(ks[1], (vocab_c, dc), jnp.float32),
        "conv_w": 0.1 * jax.random.normal(
            ks[2], (char_cnn_output_size, dc, kernel_size), jnp.float32),
        "conv_b": 0.1 * jax.random.normal(
            ks[3], (char_cnn_output_size,), jnp.float32),
        "proj_w": 0.1 * jax.random.normal(
            ks[4], (dw + char_cnn_output_size, hidden_size), jnp.float32),
        "hwy": [
            {
                "g_w": 0.1 * jax.random.normal(ks[5], (hidden_size, hidden_size)),
                "g_b": 0.1 * jax.random.normal(ks[6], (hidden_size,)),
                "t_w": 0.1 * jax.random.normal(ks[7], (hidden_size, hidden_size)),
                "t_b": 0.1 * jax.random.normal(ks[8], (hidden_size,)),
            },
            {
                "g_w": 0.1 * jax.random.normal(ks[9], (hidden_size, hidden_size)),
                "g_b": 0.1 * jax.random.normal(ks[10], (hidden_size,)),
                "t_w": 0.1 * jax.random.normal(ks[11], (hidden_size, hidden_size)),
                "t_b": jnp.zeros((hidden_size,), jnp.float32),
            },
        ],
    }
    return params


if __name__ == "__main__":
    key = jax.random.PRNGKey(0)
    k_param, k_w, k_c, k_w2, k_c2 = jax.random.split(key, 5)

    B, S, CHAR_LIMIT = 2, 8, 16
    VOCAB_W, VOCAB_C = 100, 50

    params = init_params(k_param)
    w_idxs = jax.random.randint(k_w, (B, S), 0, VOCAB_W, dtype=jnp.int32)
    c_idxs = jax.random.randint(k_c, (B, S, CHAR_LIMIT), 0, VOCAB_C, dtype=jnp.int32)

    # 1) f32 path: tight check against the pure-JAX reference.
    out = embedding_cw_forward(w_idxs, c_idxs, params, compute_dtype=jnp.float32)
    out = jax.block_until_ready(out)
    ref = embedding_cw_reference(w_idxs, c_idxs, params)
    assert out.shape == (B, S, 64), out.shape
    assert jnp.allclose(out, ref, rtol=1e-4, atol=1e-4), (
        float(jnp.max(jnp.abs(out - ref))))

    # 2) Padded tail tile + multi-step grid path (still f32, tight).
    B2, S2 = 3, 50
    w2 = jax.random.randint(k_w2, (B2, S2), 0, VOCAB_W, dtype=jnp.int32)
    c2 = jax.random.randint(k_c2, (B2, S2, CHAR_LIMIT), 0, VOCAB_C, dtype=jnp.int32)
    out2 = jax.block_until_ready(
        embedding_cw_forward(w2, c2, params, tn=128, compute_dtype=jnp.float32))
    ref2 = embedding_cw_reference(w2, c2, params)
    assert out2.shape == (B2, S2, 64), out2.shape
    assert jnp.allclose(out2, ref2, rtol=1e-4, atol=1e-4), (
        float(jnp.max(jnp.abs(out2 - ref2))))

    # 3) Default bf16 streaming path: loose tolerance (inputs/weights are
    #    rounded to bf16 before the f32-accumulating MXU -> expected drift).
    out3 = jax.block_until_ready(embedding_cw_forward(w2, c2, params))
    assert out3.shape == (B2, S2, 64), out3.shape
    assert bool(jnp.all(jnp.isfinite(out3)))
    assert jnp.allclose(out3, ref2, rtol=1e-1, atol=1e-1), (
        float(jnp.max(jnp.abs(out3 - ref2))))

    print("KERNEL_OK")
</pallas_src>

<mosaic_0001>
module attributes {stable_mosaic.version = 11 : i64} {
  func.func @embedding_cw_kernel(%arg0: i32, %arg1: memref<8x64xf32, #tpu.memory_space<vmem>>, %arg2: memref<8x256xf32, #tpu.memory_space<vmem>>, %arg3: memref<256x384xf32, #tpu.memory_space<vmem>>, %arg4: memref<64x64xf32, #tpu.memory_space<vmem>>, %arg5: memref<32x64xf32, #tpu.memory_space<vmem>>, %arg6: memref<1x64xf32, #tpu.memory_space<vmem>>, %arg7: memref<64x128xf32, #tpu.memory_space<vmem>>, %arg8: memref<64x128xf32, #tpu.memory_space<vmem>>, %arg9: memref<2x128xf32, #tpu.memory_space<vmem>>, %arg10: memref<8x64xf32, #tpu.memory_space<vmem>>) attributes {dimension_semantics = [#tpu.dimension_semantics<parallel>], iteration_bounds = array<i64: 2>, scalar_prefetch = 0 : i64, scratch_operands = 0 : i64, tpu.core_type = #tpu.core_type<tc>, window_params = [{transform_indices = @transform_0, window_bounds = array<i64: 8, 64>}, {transform_indices = @transform_1, window_bounds = array<i64: 8, 256>}, {pipeline_mode = #tpu.pipeline_mode<synchronous>, transform_indices = @transform_2, window_bounds = array<i64: 256, 384>}, {pipeline_mode = #tpu.pipeline_mode<synchronous>, transform_indices = @transform_3, window_bounds = array<i64: 64, 64>}, {pipeline_mode = #tpu.pipeline_mode<synchronous>, transform_indices = @transform_4, window_bounds = array<i64: 32, 64>}, {pipeline_mode = #tpu.pipeline_mode<synchronous>, transform_indices = @transform_5, window_bounds = array<i64: 1, 64>}, {pipeline_mode = #tpu.pipeline_mode<synchronous>, transform_indices = @transform_6, window_bounds = array<i64: 64, 128>}, {pipeline_mode = #tpu.pipeline_mode<synchronous>, transform_indices = @transform_7, window_bounds = array<i64: 64, 128>}, {pipeline_mode = #tpu.pipeline_mode<synchronous>, transform_indices = @transform_8, window_bounds = array<i64: 2, 128>}, {transform_indices = @transform_9, window_bounds = array<i64: 8, 64>}]} {
    %c0 = arith.constant 0 : index
    %c0_0 = arith.constant 0 : index
    %0 = vector.load %arg2[%c0, %c0_0] : memref<8x256xf32, #tpu.memory_space<vmem>>, vector<8x256xf32>
    %c0_1 = arith.constant 0 : index
    %c0_2 = arith.constant 0 : index
    %1 = vector.load %arg3[%c0_1, %c0_2] : memref<256x384xf32, #tpu.memory_space<vmem>>, vector<256x384xf32>
    %cst = arith.constant dense<0.000000e+00> : vector<8x384xf32>
    %2 = tpu.matmul %0, %1, %cst {dimension_numbers = #tpu.dot_dimension_numbers<[1], [0], [0], [1], [0, 0, 1, 1], [], []>} : vector<8x256xf32>, vector<256x384xf32>, vector<8x384xf32> -> vector<8x384xf32>
    %3 = vector.extract_strided_slice %2 {offsets = [0, 0], sizes = [8, 128], strides = [1, 1]} : vector<8x384xf32> to vector<8x128xf32>
    %4 = vector.extract_strided_slice %2 {offsets = [0, 128], sizes = [8, 128], strides = [1, 1]} : vector<8x384xf32> to vector<8x128xf32>
    %5 = arith.maximumf %3, %4 : vector<8x128xf32>
    %6 = vector.extract_strided_slice %2 {offsets = [0, 256], sizes = [8, 128], strides = [1, 1]} : vector<8x384xf32> to vector<8x128xf32>
    %7 = arith.maximumf %5, %6 : vector<8x128xf32>
    %c64_i32 = arith.constant 64 : i32
    %8 = tpu.dynamic_rotate %7 by %c64_i32 dim 1 : vector<8x128xf32>, i32 -> vector<8x128xf32>
    %9 = arith.maximumf %7, %8 : vector<8x128xf32>
    %c96_i32 = arith.constant 96 : i32
    %10 = tpu.dynamic_rotate %9 by %c96_i32 dim 1 : vector<8x128xf32>, i32 -> vector<8x128xf32>
    %11 = arith.maximumf %9, %10 : vector<8x128xf32>
    %12 = vector.extract_strided_slice %11 {offsets = [0, 0], sizes = [8, 32], strides = [1, 1]} : vector<8x128xf32> to vector<8x32xf32>
    %c0_3 = arith.constant 0 : index
    %c0_4 = arith.constant 0 : index
    %13 = vector.load %arg1[%c0_3, %c0_4] : memref<8x64xf32, #tpu.memory_space<vmem>>, vector<8x64xf32>
    %c0_5 = arith.constant 0 : index
    %c0_6 = arith.constant 0 : index
    %14 = vector.load %arg4[%c0_5, %c0_6] : memref<64x64xf32, #tpu.memory_space<vmem>>, vector<64x64xf32>
    %cst_7 = arith.constant dense<0.000000e+00> : vector<8x64xf32>
    %15 = tpu.matmul %13, %14, %cst_7 {dimension_numbers = #tpu.dot_dimension_numbers<[1], [0], [0], [1], [0, 0, 1, 1], [], []>} : vector<8x64xf32>, vector<64x64xf32>, vector<8x64xf32> -> vector<8x64xf32>
    %c0_8 = arith.constant 0 : index
    %c0_9 = arith.constant 0 : index
    %16 = vector.load %arg5[%c0_8, %c0_9] : memref<32x64xf32, #tpu.memory_space<vmem>>, vector<32x64xf32>
    %cst_10 = arith.constant dense<0.000000e+00> : vector<8x64xf32>
    %17 = tpu.matmul %12, %16, %cst_10 {dimension_numbers = #tpu.dot_dimension_numbers<[1], [0], [0], [1], [0, 0, 1, 1], [], []>} : vector<8x32xf32>, vector<32x64xf32>, vector<8x64xf32> -> vector<8x64xf32>
    %18 = arith.addf %15, %17 : vector<8x64xf32>
    %c0_11 = arith.constant 0 : index
    %c0_12 = arith.constant 0 : index
    %19 = vector.load %arg6[%c0_11, %c0_12] : memref<1x64xf32, #tpu.memory_space<vmem>>, vector<1x64xf32>
    %20 = vector.broadcast %19 : vector<1x64xf32> to vector<8x64xf32>
    %21 = arith.addf %18, %20 : vector<8x64xf32>
    %c0_13 = arith.constant 0 : index
    %c0_14 = arith.constant 0 : index
    %22 = vector.load %arg7[%c0_13, %c0_14] : memref<64x128xf32, #tpu.memory_space<vmem>>, vector<64x128xf32>
    %cst_15 = arith.constant dense<0.000000e+00> : vector<8x128xf32>
    %23 = tpu.matmul %21, %22, %cst_15 {dimension_numbers = #tpu.dot_dimension_numbers<[1], [0], [0], [1], [0, 0, 1, 1], [], []>} : vector<8x64xf32>, vector<64x128xf32>, vector<8x128xf32> -> vector<8x128xf32>
    %c0_16 = arith.constant 0 : index
    %c0_17 = arith.constant 0 : index
    %24 = vector.load %arg9[%c0_16, %c0_17] : memref<2x128xf32, #tpu.memory_space<vmem>>, vector<1x128xf32>
    %25 = vector.broadcast %24 : vector<1x128xf32> to vector<8x128xf32>
    %26 = arith.addf %23, %25 : vector<8x128xf32>
    %27 = vector.extract_strided_slice %26 {offsets = [0, 0], sizes = [8, 64], strides = [1, 1]} : vector<8x128xf32> to vector<8x64xf32>
    %28 = arith.negf %27 : vector<8x64xf32>
    %29 = math.exp %28 : vector<8x64xf32>
    %cst_18 = arith.constant 1.000000e+00 : f32
    %30 = vector.broadcast %cst_18 : f32 to vector<8x64xf32>
    %31 = arith.addf %30, %29 : vector<8x64xf32>
    %32 = arith.divf %30, %31 : vector<8x64xf32>
    %33 = vector.extract_strided_slice %26 {offsets = [0, 64], sizes = [8, 64], strides = [1, 1]} : vector<8x128xf32> to vector<8x64xf32>
    %cst_19 = arith.constant 0.000000e+00 : f32
    %34 = vector.broadcast %cst_19 : f32 to vector<8x64xf32>
    %35 = arith.maximumf %33, %34 : vector<8x64xf32>
    %36 = arith.mulf %32, %35 : vector<8x64xf32>
    %cst_20 = arith.constant 1.000000e+00 : f32
    %37 = vector.broadcast %cst_20 : f32 to vector<8x64xf32>
    %38 = arith.subf %37, %32 : vector<8x64xf32>
    %39 = arith.mulf %38, %21 : vector<8x64xf32>
    %40 = arith.addf %36, %39 : vector<8x64xf32>
    %c0_21 = arith.constant 0 : index
    %c0_22 = arith.constant 0 : index
    %41 = vector.load %arg8[%c0_21, %c0_22] : memref<64x128xf32, #tpu.memory_space<vmem>>, vector<64x128xf32>
    %cst_23 = arith.constant dense<0.000000e+00> : vector<8x128xf32>
    %42 = tpu.matmul %40, %41, %cst_23 {dimension_numbers = #tpu.dot_dimension_numbers<[1], [0], [0], [1], [0, 0, 1, 1], [], []>} : vector<8x64xf32>, vector<64x128xf32>, vector<8x128xf32> -> vector<8x128xf32>
    %c1 = arith.constant 1 : index
    %c0_24 = arith.constant 0 : index
    %43 = vector.load %arg9[%c1, %c0_24] : memref<2x128xf32, #tpu.memory_space<vmem>>, vector<1x128xf32>
    %44 = vector.broadcast %43 : vector<1x128xf32> to vector<8x128xf32>
    %45 = arith.addf %42, %44 : vector<8x128xf32>
    %46 = vector.extract_strided_slice %45 {offsets = [0, 0], sizes = [8, 64], strides = [1, 1]} : vector<8x128xf32> to vector<8x64xf32>
    %47 = arith.negf %46 : vector<8x64xf32>
    %48 = math.exp %47 : vector<8x64xf32>
    %cst_25 = arith.constant 1.000000e+00 : f32
    %49 = vector.broadcast %cst_25 : f32 to vector<8x64xf32>
    %50 = arith.addf %49, %48 : vector<8x64xf32>
    %51 = arith.divf %49, %50 : vector<8x64xf32>
    %52 = vector.extract_strided_slice %45 {offsets = [0, 64], sizes = [8, 64], strides = [1, 1]} : vector<8x128xf32> to vector<8x64xf32>
    %cst_26 = arith.constant 0.000000e+00 : f32
    %53 = vector.broadcast %cst_26 : f32 to vector<8x64xf32>
    %54 = arith.maximumf %52, %53 : vector<8x64xf32>
    %55 = arith.mulf %51, %54 : vector<8x64xf32>
    %cst_27 = arith.constant 1.000000e+00 : f32
    %56 = vector.broadcast %cst_27 : f32 to vector<8x64xf32>
    %57 = arith.subf %56, %51 : vector<8x64xf32>
    %58 = arith.mulf %57, %40 : vector<8x64xf32>
    %59 = arith.addf %55, %58 : vector<8x64xf32>
    %c0_28 = arith.constant 0 : index
    %c0_29 = arith.constant 0 : index
    %60 = vector.load %arg10[%c0_28, %c0_29] : memref<8x64xf32, #tpu.memory_space<vmem>>, vector<8x64xf32>
    tpu.vector_store %arg10[%c0_28, %c0_29], %59 {strides = array<i32>} : memref<8x64xf32, #tpu.memory_space<vmem>>, vector<8x64xf32>,
    return
  }
  func.func @transform_0(%arg0: i32) -> (i32, i32) {
    %c0_i32 = arith.constant 0 : i32
    %c0_i32_0 = arith.constant 0 : i32
    return %arg0, %c0_i32 : i32, i32
  }
  func.func @transform_1(%arg0: i32) -> (i32, i32) {
    %c0_i32 = arith.constant 0 : i32
    %c0_i32_0 = arith.constant 0 : i32
    return %arg0, %c0_i32 : i32, i32
  }
  func.func @transform_2(%arg0: i32) -> (i32, i32) {
    %c0_i32 = arith.constant 0 : i32
    %c0_i32_0 = arith.constant 0 : i32
    %c0_i32_1 = arith.constant 0 : i32
    return %c0_i32, %c0_i32_0 : i32, i32
  }
  func.func @transform_3(%arg0: i32) -> (i32, i32) {
    %c0_i32 = arith.constant 0 : i32
    %c0_i32_0 = arith.constant 0 : i32
    %c0_i32_1 = arith.constant 0 : i32
    return %c0_i32, %c0_i32_0 : i32, i32
  }
  func.func @transform_4(%arg0: i32) -> (i32, i32) {
    %c0_i32 = arith.constant 0 : i32
    %c0_i32_0 = arith.constant 0 : i32
    %c0_i32_1 = arith.constant 0 : i32
    return %c0_i32, %c0_i32_0 : i32, i32
  }
  func.func @transform_5(%arg0: i32) -> (i32, i32) {
    %c0_i32 = arith.constant 0 : i32
    %c0_i32_0 = arith.constant 0 : i32
    %c0_i32_1 = arith.constant 0 : i32
    return %c0_i32, %c0_i32_0 : i32, i32
  }
  func.func @transform_6(%arg0: i32) -> (i32, i32) {
    %c0_i32 = arith.constant 0 : i32
    %c0_i32_0 = arith.constant 0 : i32
    %c0_i32_1 = arith.constant 0 : i32
    return %c0_i32, %c0_i32_0 : i32, i32
  }
  func.func @transform_7(%arg0: i32) -> (i32, i32) {
    %c0_i32 = arith.constant 0 : i32
    %c0_i32_0 = arith.constant 0 : i32
    %c0_i32_1 = arith.constant 0 : i32
    return %c0_i32, %c0_i32_0 : i32, i32
  }
  func.func @transform_8(%arg0: i32) -> (i32, i32) {
    %c0_i32 = arith.constant 0 : i32
    %c0_i32_0 = arith.constant 0 : i32
    %c0_i32_1 = arith.constant 0 : i32
    return %c0_i32, %c0_i32_0 : i32, i32
  }
  func.func @transform_9(%arg0: i32) -> (i32, i32) {
    %c0_i32 = arith.constant 0 : i32
    %c0_i32_0 = arith.constant 0 : i32
    return %arg0, %c0_i32 : i32, i32
  }
}

</mosaic_0001>

<llo_original>
// kernel: tpu_custom_call.1
$region0: #{tpu_custom_call.1}
  #allocation0 [shape = 'u32[]', space=smem, size = 0x4, offset = 0x4, fixed_abs, tag = 'smem constant byte address 0x4 - core index']
  #allocation1 [shape = 'u32[144,128]{1,0:T(1,128)}', space=vmem, size = 0x12000, scoped, tag = 'internal scratch']
  %s0 = inlined_call_operand.hbm [shape: f32[16,64], index: 0, kind: input, shape index: {}]
  %s1 = inlined_call_operand.hbm [shape: f32[16,256], index: 1, kind: input, shape index: {}]
  %s2 = inlined_call_operand.hbm [shape: f32[256,384], index: 2, kind: input, shape index: {}]
  %s3 = inlined_call_operand.hbm [shape: f32[64,64], index: 3, kind: input, shape index: {}]
  %s4 = inlined_call_operand.hbm [shape: f32[32,64], index: 4, kind: input, shape index: {}]
  %s5 = inlined_call_operand.vmem [shape: f32[1,64], index: 5, kind: input, shape index: {}]
  %s6 = inlined_call_operand.hbm [shape: f32[64,128], index: 6, kind: input, shape index: {}]
  %s7 = inlined_call_operand.hbm [shape: f32[64,128], index: 7, kind: input, shape index: {}]
  %s8 = inlined_call_operand.vmem [shape: f32[2,128], index: 8, kind: input, shape index: {}]
  %s9 = inlined_call_operand.hbm [shape: f32[16,64], index: 9, kind: output, shape index: {}]
  %s10 = sld [smem:[#allocation0]]
  $region97: #{tpu_custom_call.1} parent=0
    _
  %s12 = ssub.s32 1, %s10
  %s13 = scalar_select 0, %s12, %s10
  $region1: #{tpu_custom_call.1} parent=0
    #allocation2 [shape = 'u8[8192]{0}', space=vmem, size = 0x2000, scoped, tag = 'input window, operand 0']
    #allocation3 [shape = 's32[2]{0}', space=sflag, size = 0x8, scoped, tag = 'scoped memory for tpu_custom_call.1']
    #allocation4 [shape = 's32[2]{0}', space=sflag, size = 0x8, scoped, tag = 'scoped memory for tpu_custom_call.1']
    #allocation5 [shape = 'u8[16384]{0}', space=vmem, size = 0x4000, scoped, tag = 'input window, operand 1']
    #allocation6 [shape = 's32[2]{0}', space=sflag, size = 0x8, scoped, tag = 'scoped memory for tpu_custom_call.1']
    #allocation7 [shape = 'u8[393216]{0}', space=vmem, size = 0x60000, scoped, tag = 'input window, operand 2, single buffered']
    #allocation8 [shape = 'u8[32768]{0}', space=vmem, size = 0x8000, scoped, tag = 'input window, operand 3, single buffered']
    #allocation9 [shape = 's32[1]{0}', space=sflag, size = 0x4, scoped, tag = 'scoped memory for tpu_custom_call.1']
    #allocation10 [shape = 'u8[16384]{0}', space=vmem, size = 0x4000, scoped, tag = 'input window, operand 4, single buffered']
    #allocation11 [shape = 'u8[32768]{0}', space=vmem, size = 0x8000, scoped, tag = 'input window, operand 6, single buffered']
    #allocation12 [shape = 's32[1]{0}', space=sflag, size = 0x4, scoped, tag = 'scoped memory for tpu_custom_call.1']
    #allocation13 [shape = 'u8[32768]{0}', space=vmem, size = 0x8000, scoped, tag = 'input window, operand 7, single buffered']
    #allocation14 [shape = 'u8[8192]{0}', space=vmem, size = 0x2000, scoped, tag = 'output window, operand 0']
    %14 = vsyncpa [#allocation3], 0
    %s15 = scalar_lea.sflag [#allocation3], 1
    %16 = vsyncpa %s15, 0
    %17 = vsyncpa [#allocation6], 0
    %s18 = scalar_lea.sflag [#allocation6], 1
    %19 = vsyncpa %s18, 0
    %20 = vsyncpa [#allocation9], 0
    %21 = vsyncpa [#allocation12], 0
    %22 = vsyncpa [#allocation4], 0
    %s23 = scalar_lea.sflag [#allocation4], 1
    %24 = vsyncpa %s23, 0
    loop: start=0, step=1, limit=4
    $region2: #{tpu_custom_call.1} parent=1 // loop_pre_header
      _
    $region3: #{tpu_custom_call.1} parent=1 // loop_header
      %s26 = sphi 0, %s30
      %p27 = scmp.ge.s32.totalorder %s26, 4
      %s36 = sphi 0, %s38
      %s39 = sphi 0, %s36
      %s40 = sphi 0, %s39
      %s56 = sphi 0, %s40
      %s62 = sphi 0, %s64
      %s65 = sphi 0, %s62
      %s66 = sphi 0, %s65
      %s82 = sphi 0, %s66
      %s86 = sphi 0, %s86
      %s88 = sphi 0, %s86
      %s89 = sphi 0, %s88
      %s103 = sphi 0, %s89
      %s107 = sphi 0, %s107
      %s109 = sphi 0, %s107
      %s110 = sphi 0, %s109
      %s124 = sphi 0, %s110
      %s128 = sphi 0, %s128
      %s130 = sphi 0, %s128
      %s131 = sphi 0, %s130
      %s145 = sphi 0, %s131
      %s149 = sphi 0, %s149
      %s151 = sphi 0, %s149
      %s152 = sphi 0, %s151
      %s166 = sphi 0, %s152
      %s170 = sphi 0, %s170
      %s172 = sphi 0, %s170
      %s173 = sphi 0, %s172
      %s187 = sphi 0, %s173
      %s191 = sphi 0, %s191
      %s193 = sphi 0, %s191
      %s194 = sphi 0, %s193
      %s208 = sphi 0, %s194
      %s212 = sphi 0, %s212
      %s214 = sphi 0, %s212
      %s215 = sphi 0, %s214
      %s229 = sphi 0, %s215
      %s235 = sphi 0, %s237
      %s238 = sphi 0, %s235
      %s239 = sphi 0, %s238
      %s255 = sphi 0, %s239
    $region4: #{tpu_custom_call.1} parent=1 // loop_header_branch
      %29 = sbr.rel (%p27) target = $region8
    $region5: #{tpu_custom_call.1} parent=1 // loop_body
      %s31 = ssub.s32 %s26, 1
      %s32 = ssub.s32 %s26, 2
      %s33 = sadd.s32 %s26, 1
      %s34 = ssub.s32 %s26, %s33
      %p35 = scmp.eq.s32.totalorder %s34, 0
      %s37 = sadd.s32 %s36, 1
      %s38 = scalar_select %p35, %s36, %s37
      %p41 = pneg %p35
      %p42 = scmp.eq.s32.totalorder %s26, 1
      %p43 = por %p41, %p42
      %p44 = scmp.ne.s32.totalorder %s36, %s39
      %p45 = scmp.eq.s32.totalorder %s26, 0
      %p46 = por %p44, %p45
      %p47 = scmp.ne.s32.totalorder %s36, %s39
      %p48 = scmp.eq.s32.totalorder %s31, 1
      %p49 = por %p47, %p48
      %p50 = scmp.ne.s32.totalorder %s39, %s40
      %p51 = scmp.eq.s32.totalorder %s31, 0
      %p52 = por %p50, %p51
      %p53 = scmp.ne.s32.totalorder %s39, %s40
      %p54 = scmp.eq.s32.totalorder %s32, 1
      %p55 = por %p53, %p54
      %p57 = scmp.ne.s32.totalorder %s40, %s56
      %p58 = scmp.eq.s32.totalorder %s32, 0
      %p59 = por %p57, %p58
      %s60 = ssub.s32 %s26, %s33
      %p61 = scmp.eq.s32.totalorder %s60, 0
      %s63 = sadd.s32 %s62, 1
      %s64 = scalar_select %p61, %s62, %s63
      %p67 = pneg %p61
      %p68 = scmp.eq.s32.totalorder %s26, 1
      %p69 = por %p67, %p68
      %p70 = scmp.ne.s32.totalorder %s62, %s65
      %p71 = scmp.eq.s32.totalorder %s26, 0
      %p72 = por %p70, %p71
      %p73 = scmp.ne.s32.totalorder %s62, %s65
      %p74 = scmp.eq.s32.totalorder %s31, 1
      %p75 = por %p73, %p74
      %p76 = scmp.ne.s32.totalorder %s65, %s66
      %p77 = scmp.eq.s32.totalorder %s31, 0
      %p78 = por %p76, %p77
      %p79 = scmp.ne.s32.totalorder %s65, %s66
      %p80 = scmp.eq.s32.totalorder %s32, 1
      %p81 = por %p79, %p80
      %p83 = scmp.ne.s32.totalorder %s66, %s82
      %p84 = scmp.eq.s32.totalorder %s32, 0
      %p85 = por %p83, %p84
      %s87 = sadd.s32 %s86, 1
      %p90 = scmp.eq.s32.totalorder %s26, 1
      %p91 = scmp.ne.s32.totalorder %s86, %s88
      %p92 = scmp.eq.s32.totalorder %s26, 0
      %p93 = por %p91, %p92
      %p94 = scmp.ne.s32.totalorder %s86, %s88
      %p95 = scmp.eq.s32.totalorder %s31, 1
      %p96 = por %p94, %p95
      %p97 = scmp.ne.s32.totalorder %s88, %s89
      %p98 = scmp.eq.s32.totalorder %s31, 0
      %p99 = por %p97, %p98
      %p100 = scmp.ne.s32.totalorder %s88, %s89
      %p101 = scmp.eq.s32.totalorder %s32, 1
      %p102 = por %p100, %p101
      %p104 = scmp.ne.s32.totalorder %s89, %s103
      %p105 = scmp.eq.s32.totalorder %s32, 0
      %p106 = por %p104, %p105
      %s108 = sadd.s32 %s107, 1
      %p111 = scmp.eq.s32.totalorder %s26, 1
      %p112 = scmp.ne.s32.totalorder %s107, %s109
      %p113 = scmp.eq.s32.totalorder %s26, 0
      %p114 = por %p112, %p113
      %p115 = scmp.ne.s32.totalorder %s107, %s109
      %p116 = scmp.eq.s32.totalorder %s31, 1
      %p117 = por %p115, %p116
      %p118 = scmp.ne.s32.totalorder %s109, %s110
      %p119 = scmp.eq.s32.totalorder %s31, 0
      %p120 = por %p118, %p119
      %p121 = scmp.ne.s32.totalorder %s109, %s110
      %p122 = scmp.eq.s32.totalorder %s32, 1
      %p123 = por %p121, %p122
      %p125 = scmp.ne.s32.totalorder %s110, %s124
      %p126 = scmp.eq.s32.totalorder %s32, 0
      %p127 = por %p125, %p126
      %s129 = sadd.s32 %s128, 1
      %p132 = scmp.eq.s32.totalorder %s26, 1
      %p133 = scmp.ne.s32.totalorder %s128, %s130
      %p134 = scmp.eq.s32.totalorder %s26, 0
      %p135 = por %p133, %p134
      %p136 = scmp.ne.s32.totalorder %s128, %s130
      %p137 = scmp.eq.s32.totalorder %s31, 1
      %p138 = por %p136, %p137
      %p139 = scmp.ne.s32.totalorder %s130, %s131
      %p140 = scmp.eq.s32.totalorder %s31, 0
      %p141 = por %p139, %p140
      %p142 = scmp.ne.s32.totalorder %s130, %s131
      %p143 = scmp.eq.s32.totalorder %s32, 1
      %p144 = por %p142, %p143
      %p146 = scmp.ne.s32.totalorder %s131, %s145
      %p147 = scmp.eq.s32.totalorder %s32, 0
      %p148 = por %p146, %p147
      %s150 = sadd.s32 %s149, 1
      %p153 = scmp.eq.s32.totalorder %s26, 1
      %p154 = scmp.ne.s32.totalorder %s149, %s151
      %p155 = scmp.eq.s32.totalorder %s26, 0
      %p156 = por %p154, %p155
      %p157 = scmp.ne.s32.totalorder %s149, %s151
      %p158 = scmp.eq.s32.totalorder %s31, 1
      %p159 = por %p157, %p158
      %p160 = scmp.ne.s32.totalorder %s151, %s152
      %p161 = scmp.eq.s32.totalorder %s31, 0
      %p162 = por %p160, %p161
      %p163 = scmp.ne.s32.totalorder %s151, %s152
      %p164 = scmp.eq.s32.totalorder %s32, 1
      %p165 = por %p163, %p164
      %p167 = scmp.ne.s32.totalorder %s152, %s166
      %p168 = scmp.eq.s32.totalorder %s32, 0
      %p169 = por %p167, %p168
      %s171 = sadd.s32 %s170, 1
      %p174 = scmp.eq.s32.totalorder %s26, 1
      %p175 = scmp.ne.s32.totalorder %s170, %s172
      %p176 = scmp.eq.s32.totalorder %s26, 0
      %p177 = por %p175, %p176
      %p178 = scmp.ne.s32.totalorder %s170, %s172
      %p179 = scmp.eq.s32.totalorder %s31, 1
      %p180 = por %p178, %p179
      %p181 = scmp.ne.s32.totalorder %s172, %s173
      %p182 = scmp.eq.s32.totalorder %s31, 0
      %p183 = por %p181, %p182
      %p184 = scmp.ne.s32.totalorder %s172, %s173
      %p185 = scmp.eq.s32.totalorder %s32, 1
      %p186 = por %p184, %p185
      %p188 = scmp.ne.s32.totalorder %s173, %s187
      %p189 = scmp.eq.s32.totalorder %s32, 0
      %p190 = por %p188, %p189
      %s192 = sadd.s32 %s191, 1
      %p195 = scmp.eq.s32.totalorder %s26, 1
      %p196 = scmp.ne.s32.totalorder %s191, %s193
      %p197 = scmp.eq.s32.totalorder %s26, 0
      %p198 = por %p196, %p197
      %p199 = scmp.ne.s32.totalorder %s191, %s193
      %p200 = scmp.eq.s32.totalorder %s31, 1
      %p201 = por %p199, %p200
      %p202 = scmp.ne.s32.totalorder %s193, %s194
      %p203 = scmp.eq.s32.totalorder %s31, 0
      %p204 = por %p202, %p203
      %p205 = scmp.ne.s32.totalorder %s193, %s194
      %p206 = scmp.eq.s32.totalorder %s32, 1
      %p207 = por %p205, %p206
      %p209 = scmp.ne.s32.totalorder %s194, %s208
      %p210 = scmp.eq.s32.totalorder %s32, 0
      %p211 = por %p209, %p210
      %s213 = sadd.s32 %s212, 1
      %p216 = scmp.eq.s32.totalorder %s26, 1
      %p217 = scmp.ne.s32.totalorder %s212, %s214
      %p218 = scmp.eq.s32.totalorder %s26, 0
      %p219 = por %p217, %p218
      %p220 = scmp.ne.s32.totalorder %s212, %s214
      %p221 = scmp.eq.s32.totalorder %s31, 1
      %p222 = por %p220, %p221
      %p223 = scmp.ne.s32.totalorder %s214, %s215
      %p224 = scmp.eq.s32.totalorder %s31, 0
      %p225 = por %p223, %p224
      %p226 = scmp.ne.s32.totalorder %s214, %s215
      %p227 = scmp.eq.s32.totalorder %s32, 1
      %p228 = por %p226, %p227
      %p230 = scmp.ne.s32.totalorder %s215, %s229
      %p231 = scmp.eq.s32.totalorder %s32, 0
      %p232 = por %p230, %p231
      %s233 = ssub.s32 %s26, %s33
      %p234 = scmp.eq.s32.totalorder %s233, 0
      %s236 = sadd.s32 %s235, 1
      %s237 = scalar_select %p234, %s235, %s236
      %p240 = pneg %p234
      %p241 = scmp.eq.s32.totalorder %s26, 1
      %p242 = por %p240, %p241
      %p243 = scmp.ne.s32.totalorder %s235, %s238
      %p244 = scmp.eq.s32.totalorder %s26, 0
      %p245 = por %p243, %p244
      %p246 = scmp.ne.s32.totalorder %s235, %s238
      %p247 = scmp.eq.s32.totalorder %s31, 1
      %p248 = por %p246, %p247
      %p249 = scmp.ne.s32.totalorder %s238, %s239
      %p250 = scmp.eq.s32.totalorder %s31, 0
      %p251 = por %p249, %p250
      %p252 = scmp.ne.s32.totalorder %s238, %s239
      %p253 = scmp.eq.s32.totalorder %s32, 1
      %p254 = por %p252, %p253
      %p256 = scmp.ne.s32.totalorder %s239, %s255
      %p257 = scmp.eq.s32.totalorder %s32, 0
      %p258 = por %p256, %p257
      %p259 = scmp.le.s32.totalorder 1, %s26
      %p260 = scmp.lt.s32.totalorder %s26, 3
      %p261 = pnand %p259, %p260
      %p262 = pneg %p261
      // Predicated region
      $region9: #{tpu_custom_call.1} parent=5 // pred_check
        _
      $region10: #{tpu_custom_call.1} parent=5 // pred_check_branch
        %264 = sbr.rel (%p261) target = $region12
      $region11: #{tpu_custom_call.1} parent=5 // pred_region
        %s265 = ssub.s32 %s26, 1
        // Predicated region
        $region13: #{tpu_custom_call.1} parent=11 // pred_check
          %p266 = pneg %p99
        $region14: #{tpu_custom_call.1} parent=11 // pred_check_branch
          %268 = sbr.rel (%p266) target = $region16
        $region15: #{tpu_custom_call.1} parent=11 // pred_region
          %s270 = ssub.s32 12288, 12288
          %271 = vsyncadd [#allocation6], %s270
          %s272 = sshll.u32 [#allocation7], 4
          %s273 = int_to_ptr.vmem [resolvable:$true] %s272
          %278 = dma.hbm_to_vmem [thread:$0]  %s2, 12288, %s273, [#allocation6], 384, 384, 24
        $region16: #{tpu_custom_call.1} parent=11 // pred_fallthru
          _
        // Predicated region
        $region17: #{tpu_custom_call.1} parent=11 // pred_check
          %p279 = pneg %p120
        $region18: #{tpu_custom_call.1} parent=11 // pred_check_branch
          %281 = sbr.rel (%p279) target = $region20
        $region19: #{tpu_custom_call.1} parent=11 // pred_region
          %s283 = ssub.s32 1024, 1024
          %284 = vsyncadd [#allocation9], %s283
          %s285 = sshll.u32 [#allocation8], 4
          %s286 = int_to_ptr.vmem [resolvable:$true] %s285
          %291 = dma.hbm_to_vmem [thread:$0]  %s3, 1024, %s286, [#allocation9], 128, 128, 8
        $region20: #{tpu_custom_call.1} parent=11 // pred_fallthru
          _
        // Predicated region
        $region21: #{tpu_custom_call.1} parent=11 // pred_check
          %p292 = pneg %p141
        $region22: #{tpu_custom_call.1} parent=11 // pred_check_branch
          %294 = sbr.rel (%p292) target = $region24
        $region23: #{tpu_custom_call.1} parent=11 // pred_region
          %s296 = ssub.s32 512, 512
          %297 = vsyncadd [#allocation9], %s296
          %s298 = sshll.u32 [#allocation10], 4
          %s299 = int_to_ptr.vmem [resolvable:$true] %s298
          %304 = dma.hbm_to_vmem [thread:$0]  %s4, 512, %s299, [#allocation9], 128, 128, 8
        $region24: #{tpu_custom_call.1} parent=11 // pred_fallthru
          _
        // Predicated region
        $region25: #{tpu_custom_call.1} parent=11 // pred_check
          %p305 = pneg %p162
        $region26: #{tpu_custom_call.1} parent=11 // pred_check_branch
          %307 = sbr.rel (%p305) target = $region28
        $region27: #{tpu_custom_call.1} parent=11 // pred_region
          _
        $region28: #{tpu_custom_call.1} parent=11 // pred_fallthru
          _
        // Predicated region
        $region29: #{tpu_custom_call.1} parent=11 // pred_check
          %p308 = pneg %p183
        $region30: #{tpu_custom_call.1} parent=11 // pred_check_branch
          %310 = sbr.rel (%p308) target = $region32
        $region31: #{tpu_custom_call.1} parent=11 // pred_region
          %s312 = ssub.s32 1024, 1024
          %313 = vsyncadd [#allocation12], %s312
          %s314 = sshll.u32 [#allocation11], 4
          %s315 = int_to_ptr.vmem [resolvable:$true] %s314
          %320 = dma.hbm_to_vmem [thread:$0]  %s6, 1024, %s315, [#allocation12], 128, 128, 8
        $region32: #{tpu_custom_call.1} parent=11 // pred_fallthru
          _
        // Predicated region
        $region33: #{tpu_custom_call.1} parent=11 // pred_check
          %p321 = pneg %p204
        $region34: #{tpu_custom_call.1} parent=11 // pred_check_branch
          %323 = sbr.rel (%p321) target = $region36
        $region35: #{tpu_custom_call.1} parent=11 // pred_region
          %s325 = ssub.s32 1024, 1024
          %326 = vsyncadd [#allocation12], %s325
          %s327 = sshll.u32 [#allocation13], 4
          %s328 = int_to_ptr.vmem [resolvable:$true] %s327
          %333 = dma.hbm_to_vmem [thread:$0]  %s7, 1024, %s328, [#allocation12], 128, 128, 8
        $region36: #{tpu_custom_call.1} parent=11 // pred_fallthru
          _
        // Predicated region
        $region37: #{tpu_custom_call.1} parent=11 // pred_check
          %p334 = pneg %p225
        $region38: #{tpu_custom_call.1} parent=11 // pred_check_branch
          %336 = sbr.rel (%p334) target = $region40
        $region39: #{tpu_custom_call.1} parent=11 // pred_region
          _
        $region40: #{tpu_custom_call.1} parent=11 // pred_fallthru
          _
      $region12: #{tpu_custom_call.1} parent=5 // pred_fallthru
        _
      %p337 = scmp.lt.s32.totalorder %s26, 2
      // Predicated region
      $region41: #{tpu_custom_call.1} parent=5 // pred_check
        %p338 = pneg %p337
      $region42: #{tpu_custom_call.1} parent=5 // pred_check_branch
        %340 = sbr.rel (%p338) target = $region44
      $region43: #{tpu_custom_call.1} parent=5 // pred_region
        // Predicated region
        $region45: #{tpu_custom_call.1} parent=43 // pred_check
          %p341 = pneg %p46
        $region46: #{tpu_custom_call.1} parent=43 // pred_check_branch
          %343 = sbr.rel (%p341) target = $region48
        $region47: #{tpu_custom_call.1} parent=43 // pred_region
          %s344 = sand.u32 %s36, 1
          %s345 = scalar_lea.sflag [#allocation3], %s344
          %s346 = sand.u32 %s36, 1
          %s347 = smul.addr %s346, 8
          %s348 = scalar_lea.vmem [#allocation2], %s347
          %s350 = ssub.s32 128, 128
          %351 = vsyncadd %s345, %s350
          %s352 = smul.addr %s26, 128
          %s353 = scalar_lea.hbm %s0, %s352
          %s355 = sshll.u32 %s348, 4
          %s356 = int_to_ptr.vmem [resolvable:$true] %s355
          %358 = dma.hbm_to_vmem [thread:$0]  %s353, 128, %s356, %s345
        $region48: #{tpu_custom_call.1} parent=43 // pred_fallthru
          _
        // Predicated region
        $region49: #{tpu_custom_call.1} parent=43 // pred_check
          %p359 = pneg %p72
        $region50: #{tpu_custom_call.1} parent=43 // pred_check_branch
          %361 = sbr.rel (%p359) target = $region52
        $region51: #{tpu_custom_call.1} parent=43 // pred_region
          %s362 = sand.u32 %s26, 1
          %s363 = scalar_lea.sflag [#allocation6], %s362
          %s364 = sand.u32 %s62, 1
          %s365 = smul.addr %s364, 16
          %s366 = scalar_lea.vmem [#allocation5], %s365
          %s368 = ssub.s32 256, 256
          %369 = vsyncadd %s363, %s368
          %s370 = smul.addr %s26, 2
          %s371 = smul.addr %s370, 128
          %s372 = scalar_lea.hbm %s1, %s371
          %s374 = sshll.u32 %s366, 4
          %s375 = int_to_ptr.vmem [resolvable:$true] %s374
          %377 = dma.hbm_to_vmem [thread:$0]  %s372, 256, %s375, %s363
        $region52: #{tpu_custom_call.1} parent=43 // pred_fallthru
          _
      $region44: #{tpu_custom_call.1} parent=5 // pred_fallthru
        _
      %p378 = scmp.le.s32.totalorder 1, %s26
      %p379 = scmp.lt.s32.totalorder %s26, 3
      %p380 = pnand %p378, %p379
      %p381 = pneg %p380
      // Predicated region
      $region53: #{tpu_custom_call.1} parent=5 // pred_check
        _
      $region54: #{tpu_custom_call.1} parent=5 // pred_check_branch
        %383 = sbr.rel (%p380) target = $region56
      $region55: #{tpu_custom_call.1} parent=5 // pred_region
        %s384 = ssub.s32 %s26, 1
        %s385 = sand.u32 %s39, 1
        %s386 = scalar_lea.sflag [#allocation3], %s385
        %s387 = sand.u32 %s39, 1
        %s388 = smul.addr %s387, 8
        %s389 = scalar_lea.vmem [#allocation2], %s388
        // Predicated region
        $region57: #{tpu_custom_call.1} parent=55 // pred_check
          %p390 = pneg %p52
        $region58: #{tpu_custom_call.1} parent=55 // pred_check_branch
          %392 = sbr.rel (%p390) target = $region60
        $region59: #{tpu_custom_call.1} parent=55 // pred_region
          %393 = dma.done %s386, 128
        $region60: #{tpu_custom_call.1} parent=55 // pred_fallthru
          _
        %s394 = sand.u32 %s31, 1
        %s395 = scalar_lea.sflag [#allocation6], %s394
        %s396 = sand.u32 %s65, 1
        %s397 = smul.addr %s396, 16
        %s398 = scalar_lea.vmem [#allocation5], %s397
        // Predicated region
        $region61: #{tpu_custom_call.1} parent=55 // pred_check
          %p399 = pneg %p78
        $region62: #{tpu_custom_call.1} parent=55 // pred_check_branch
          %401 = sbr.rel (%p399) target = $region64
        $region63: #{tpu_custom_call.1} parent=55 // pred_region
          %402 = dma.done %s395, 256
        $region64: #{tpu_custom_call.1} parent=55 // pred_fallthru
          _
        // Predicated region
        $region65: #{tpu_custom_call.1} parent=55 // pred_check
          %p403 = pneg %p99
        $region66: #{tpu_custom_call.1} parent=55 // pred_check_branch
          %405 = sbr.rel (%p403) target = $region68
        $region67: #{tpu_custom_call.1} parent=55 // pred_region
          %406 = dma.done [#allocation6], 12288
        $region68: #{tpu_custom_call.1} parent=55 // pred_fallthru
          _
        // Predicated region
        $region69: #{tpu_custom_call.1} parent=55 // pred_check
          %p407 = pneg %p120
        $region70: #{tpu_custom_call.1} parent=55 // pred_check_branch
          %409 = sbr.rel (%p407) target = $region72
        $region71: #{tpu_custom_call.1} parent=55 // pred_region
          %410 = dma.done [#allocation9], 1024
        $region72: #{tpu_custom_call.1} parent=55 // pred_fallthru
          _
        // Predicated region
        $region73: #{tpu_custom_call.1} parent=55 // pred_check
          %p411 = pneg %p141
        $region74: #{tpu_custom_call.1} parent=55 // pred_check_branch
          %413 = sbr.rel (%p411) target = $region76
        $region75: #{tpu_custom_call.1} parent=55 // pred_region
          %414 = dma.done [#allocation9], 512
        $region76: #{tpu_custom_call.1} parent=55 // pred_fallthru
          _
        // Predicated region
        $region77: #{tpu_custom_call.1} parent=55 // pred_check
          %p415 = pneg %p183
        $region78: #{tpu_custom_call.1} parent=55 // pred_check_branch
          %417 = sbr.rel (%p415) target = $region80
        $region79: #{tpu_custom_call.1} parent=55 // pred_region
          %418 = dma.done [#allocation12], 1024
        $region80: #{tpu_custom_call.1} parent=55 // pred_fallthru
          _
        // Predicated region
        $region81: #{tpu_custom_call.1} parent=55 // pred_check
          %p419 = pneg %p204
        $region82: #{tpu_custom_call.1} parent=55 // pred_check_branch
          %421 = sbr.rel (%p419) target = $region84
        $region83: #{tpu_custom_call.1} parent=55 // pred_region
          %422 = dma.done [#allocation12], 1024
        $region84: #{tpu_custom_call.1} parent=55 // pred_fallthru
          _
        %s423 = sand.u32 %s39, 1
        %s424 = scalar_lea.sflag [#allocation3], %s423
        %s425 = sand.u32 %s39, 1
        %s426 = smul.addr %s425, 8
        %s427 = scalar_lea.vmem [#allocation2], %s426
        %p428 = pneg %p52
        %p429 = pneg %p49
        %s430 = sand.u32 %s31, 1
        %s431 = scalar_lea.sflag [#allocation6], %s430
        %s432 = sand.u32 %s65, 1
        %s433 = smul.addr %s432, 16
        %s434 = scalar_lea.vmem [#allocation5], %s433
        %p435 = pneg %p78
        %p436 = pneg %p75
        %p437 = pneg %p99
        %p438 = pneg %p96
        %p439 = pneg %p120
        %p440 = pneg %p117
        %p441 = pneg %p141
        %p442 = pneg %p138
        %p443 = pneg %p162
        %p444 = pneg %p159
        %p445 = pneg %p183
        %p446 = pneg %p180
        %p447 = pneg %p204
        %p448 = pneg %p201
        %p449 = pneg %p225
        %p450 = pneg %p222
        %p451 = pneg %p251
        %p452 = pneg %p248
        %s453 = sand.u32 %s238, 1
        %s454 = scalar_lea.sflag [#allocation4], %s453
        %s455 = sand.u32 %s238, 1
        %s456 = smul.addr %s455, 8
        %s457 = scalar_lea.vmem [#allocation14], %s456
        %v458 = vld [vmem:[%s398] sm:$0xff]
        %v459 = vld [vmem:[%s398 + $0x8] sm:$0xff]
        %v460 = vld [vmem:[#allocation7] sm:$0xff]
        %v461 = vld [vmem:[#allocation7 + $0x8] sm:$0xff]
        %v462 = vld [vmem:[#allocation7 + $0x10] sm:$0xff]
        %v463 = vld [vmem:[#allocation7 + $0x18] sm:$0xff]
        %v464 = vld [vmem:[#allocation7 + $0x20] sm:$0xff]
        %v465 = vld [vmem:[#allocation7 + $0x28] sm:$0xff]
        %v466 = vld [vmem:[#allocation7 + $0x30] sm:$0xff]
        %v467 = vld [vmem:[#allocation7 + $0x38] sm:$0xff]
        %v468 = vld [vmem:[#allocation7 + $0x40] sm:$0xff]
        %v469 = vld [vmem:[#allocation7 + $0x48] sm:$0xff]
        %v470 = vld [vmem:[#allocation7 + $0x50] sm:$0xff]
        %v471 = vld [vmem:[#allocation7 + $0x58] sm:$0xff]
        %v472 = vld [vmem:[#allocation7 + $0x60] sm:$0xff]
        %v473 = vld [vmem:[#allocation7 + $0x68] sm:$0xff]
        %v474 = vld [vmem:[#allocation7 + $0x70] sm:$0xff]
        %v475 = vld [vmem:[#allocation7 + $0x78] sm:$0xff]
        %v476 = vld [vmem:[#allocation7 + $0x80] sm:$0xff]
        %v477 = vld [vmem:[#allocation7 + $0x88] sm:$0xff]
        %v478 = vld [vmem:[#allocation7 + $0x90] sm:$0xff]
        %v479 = vld [vmem:[#allocation7 + $0x98] sm:$0xff]
        %v480 = vld [vmem:[#allocation7 + $0xa0] sm:$0xff]
        %v481 = vld [vmem:[#allocation7 + $0xa8] sm:$0xff]
        %v482 = vld [vmem:[#allocation7 + $0xb0] sm:$0xff]
        %v483 = vld [vmem:[#allocation7 + $0xb8] sm:$0xff]
        %v484 = vld [vmem:[#allocation7 + $0xc0] sm:$0xff]
        %v485 = vld [vmem:[#allocation7 + $0xc8] sm:$0xff]
        %v486 = vld [vmem:[#allocation7 + $0xd0] sm:$0xff]
        %v487 = vld [vmem:[#allocation7 + $0xd8] sm:$0xff]
        %v488 = vld [vmem:[#allocation7 + $0xe0] sm:$0xff]
        %v489 = vld [vmem:[#allocation7 + $0xe8] sm:$0xff]
        %v490 = vld [vmem:[#allocation7 + $0xf0] sm:$0xff]
        %v491 = vld [vmem:[#allocation7 + $0xf8] sm:$0xff]
        %v492 = vld [vmem:[#allocation7 + $0x100] sm:$0xff]
        %v493 = vld [vmem:[#allocation7 + $0x108] sm:$0xff]
        %v494 = vld [vmem:[#allocation7 + $0x110] sm:$0xff]
        %v495 = vld [vmem:[#allocation7 + $0x118] sm:$0xff]
        %v496 = vld [vmem:[#allocation7 + $0x120] sm:$0xff]
        %v497 = vld [vmem:[#allocation7 + $0x128] sm:$0xff]
        %v498 = vld [vmem:[#allocation7 + $0x130] sm:$0xff]
        %v499 = vld [vmem:[#allocation7 + $0x138] sm:$0xff]
        %v500 = vld [vmem:[#allocation7 + $0x140] sm:$0xff]
        %v501 = vld [vmem:[#allocation7 + $0x148] sm:$0xff]
        %v502 = vld [vmem:[#allocation7 + $0x150] sm:$0xff]
        %v503 = vld [vmem:[#allocation7 + $0x158] sm:$0xff]
        %v504 = vld [vmem:[#allocation7 + $0x160] sm:$0xff]
        %v505 = vld [vmem:[#allocation7 + $0x168] sm:$0xff]
        %v506 = vld [vmem:[#allocation7 + $0x170] sm:$0xff]
        %v507 = vld [vmem:[#allocation7 + $0x178] sm:$0xff]
        %v508 = vld [vmem:[#allocation7 + $0x180] sm:$0xff]
        %v509 = vld [vmem:[#allocation7 + $0x188] sm:$0xff]
        %v510 = vld [vmem:[#allocation7 + $0x190] sm:$0xff]
        %v511 = vld [vmem:[#allocation7 + $0x198] sm:$0xff]
        %v512 = vld [vmem:[#allocation7 + $0x1a0] sm:$0xff]
        %v513 = vld [vmem:[#allocation7 + $0x1a8] sm:$0xff]
        %v514 = vld [vmem:[#allocation7 + $0x1b0] sm:$0xff]
        %v515 = vld [vmem:[#allocation7 + $0x1b8] sm:$0xff]
        %v516 = vld [vmem:[#allocation7 + $0x1c0] sm:$0xff]
        %v517 = vld [vmem:[#allocation7 + $0x1c8] sm:$0xff]
        %v518 = vld [vmem:[#allocation7 + $0x1d0] sm:$0xff]
        %v519 = vld [vmem:[#allocation7 + $0x1d8] sm:$0xff]
        %v520 = vld [vmem:[#allocation7 + $0x1e0] sm:$0xff]
        %v521 = vld [vmem:[#allocation7 + $0x1e8] sm:$0xff]
        %v522 = vld [vmem:[#allocation7 + $0x1f0] sm:$0xff]
        %v523 = vld [vmem:[#allocation7 + $0x1f8] sm:$0xff]
        %v524 = vld [vmem:[#allocation7 + $0x200] sm:$0xff]
        %v525 = vld [vmem:[#allocation7 + $0x208] sm:$0xff]
        %v526 = vld [vmem:[#allocation7 + $0x210] sm:$0xff]
        %v527 = vld [vmem:[#allocation7 + $0x218] sm:$0xff]
        %v528 = vld [vmem:[#allocation7 + $0x220] sm:$0xff]
        %v529 = vld [vmem:[#allocation7 + $0x228] sm:$0xff]
        %v530 = vld [vmem:[#allocation7 + $0x230] sm:$0xff]
        %v531 = vld [vmem:[#allocation7 + $0x238] sm:$0xff]
        %v532 = vld [vmem:[#allocation7 + $0x240] sm:$0xff]
        %v533 = vld [vmem:[#allocation7 + $0x248] sm:$0xff]
        %v534 = vld [vmem:[#allocation7 + $0x250] sm:$0xff]
        %v535 = vld [vmem:[#allocation7 + $0x258] sm:$0xff]
        %v536 = vld [vmem:[#allocation7 + $0x260] sm:$0xff]
        %v537 = vld [vmem:[#allocation7 + $0x268] sm:$0xff]
        %v538 = vld [vmem:[#allocation7 + $0x270] sm:$0xff]
        %v539 = vld [vmem:[#allocation7 + $0x278] sm:$0xff]
        %v540 = vld [vmem:[#allocation7 + $0x280] sm:$0xff]
        %v541 = vld [vmem:[#allocation7 + $0x288] sm:$0xff]
        %v542 = vld [vmem:[#allocation7 + $0x290] sm:$0xff]
        %v543 = vld [vmem:[#allocation7 + $0x298] sm:$0xff]
        %v544 = vld [vmem:[#allocation7 + $0x2a0] sm:$0xff]
        %v545 = vld [vmem:[#allocation7 + $0x2a8] sm:$0xff]
        %v546 = vld [vmem:[#allocation7 + $0x2b0] sm:$0xff]
        %v547 = vld [vmem:[#allocation7 + $0x2b8] sm:$0xff]
        %v548 = vld [vmem:[#allocation7 + $0x2c0] sm:$0xff]
        %v549 = vld [vmem:[#allocation7 + $0x2c8] sm:$0xff]
        %v550 = vld [vmem:[#allocation7 + $0x2d0] sm:$0xff]
        %v551 = vld [vmem:[#allocation7 + $0x2d8] sm:$0xff]
        %v552 = vld [vmem:[#allocation7 + $0x2e0] sm:$0xff]
        %v553 = vld [vmem:[#allocation7 + $0x2e8] sm:$0xff]
        %v554 = vld [vmem:[#allocation7 + $0x2f0] sm:$0xff]
        %v555 = vld [vmem:[#allocation7 + $0x2f8] sm:$0xff]
        %556 = vmatprep.subr.mxu0 %v461
        %557 = vmatpush1.msra.mxu0 %v460
        %558 = vmatprep.subr.mxu0 %v464
        %559 = vmatpush1.msra.mxu0 %v463
        %560 = vmatprep.subr.mxu0 %v467
        %561 = vmatpush1.msra.mxu0 %v466
        %562 = vmatprep.subr.mxu0 %v470
        %563 = vmatpush1.msra.mxu0 %v469
        %564 = vmatprep.subr.mxu0 %v473
        %565 = vmatpush1.msra.mxu0 %v472
        %566 = vmatprep.subr.mxu0 %v476
        %567 = vmatpush1.msra.mxu0 %v475
        %568 = vmatprep.subr.mxu0 %v479
        %569 = vmatpush1.msra.mxu0 %v478
        %570 = vmatprep.subr.mxu0 %v482
        %571 = vmatpush1.msra.mxu0 %v481
        %572 = vmatprep.subr.mxu0 %v485
        %573 = vmatpush1.msra.mxu0 %v484
        %574 = vmatprep.subr.mxu0 %v488
        %575 = vmatpush1.msra.mxu0 %v487
        %576 = vmatprep.subr.mxu0 %v491
        %577 = vmatpush1.msra.mxu0 %v490
        %578 = vmatprep.subr.mxu0 %v494
        %579 = vmatpush1.msra.mxu0 %v493
        %580 = vmatprep.subr.mxu0 %v497
        %581 = vmatpush1.msra.mxu0 %v496
        %582 = vmatprep.subr.mxu0 %v500
        %583 = vmatpush1.msra.mxu0 %v499
        %584 = vmatprep.subr.mxu0 %v503
        %585 = vmatpush1.msra.mxu0 %v502
        %586 = vmatprep.subr.mxu0 %v506
        %587 = vmatpush1.msra.mxu0 %v505
        %588 = vmatprep.subr.mxu0 %v509
        %589 = vmatpush1.msra.mxu0 %v508
        %590 = vmatprep.subr.mxu0 %v512
        %591 = vmatpush1.msra.mxu0 %v511
        %592 = vmatprep.subr.mxu0 %v515
        %593 = vmatpush1.msra.mxu0 %v514
        %594 = vmatprep.subr.mxu0 %v518
        %595 = vmatpush1.msra.mxu0 %v517
        %596 = vmatprep.subr.mxu0 %v521
        %597 = vmatpush1.msra.mxu0 %v520
        %598 = vmatprep.subr.mxu0 %v524
        %599 = vmatpush1.msra.mxu0 %v523
        %600 = vmatprep.subr.mxu0 %v527
        %601 = vmatpush1.msra.mxu0 %v526
        %602 = vmatprep.subr.mxu0 %v530
        %603 = vmatpush1.msra.mxu0 %v529
        %604 = vmatprep.subr.mxu0 %v533
        %605 = vmatpush1.msra.mxu0 %v532
        %606 = vmatprep.subr.mxu0 %v536
        %607 = vmatpush1.msra.mxu0 %v535
        %608 = vmatprep.subr.mxu0 %v539
        %609 = vmatpush1.msra.mxu0 %v538
        %610 = vmatprep.subr.mxu0 %v542
        %611 = vmatpush1.msra.mxu0 %v541
        %612 = vmatprep.subr.mxu0 %v545
        %613 = vmatpush1.msra.mxu0 %v544
        %614 = vmatprep.subr.mxu0 %v548
        %615 = vmatpush1.msra.mxu0 %v547
        %616 = vmatprep.subr.mxu0 %v551
        %617 = vmatpush1.msra.mxu0 %v550
        %618 = vmatprep.subr.mxu0 %v554
        %619 = vmatpush1.msra.mxu0 %v553
        %620 = vmatprep.mubr.f32.mxu0 %v459
        %621 = vmatmul.mubr.f32.gmra.mrb[0].mxu0 %v458
        %v622 = vpop.f32.mrb[0].mxu0
        %v623 = vadd.f32 0.0, %v622
        %v624 = vpop.f32.mrb[0].mxu0
        %v625 = vadd.f32 0.0, %v624
        %626 = vdwg.mxu0
        %627 = vmatprep.subr.mxu0 0.0
        %628 = vmatpush1.msra.mxu0 %v462
        %629 = vmatprep.subr.mxu0 0.0
        %630 = vmatpush1.msra.mxu0 %v465
        %631 = vmatprep.subr.mxu0 0.0
        %632 = vmatpush1.msra.mxu0 %v468
        %633 = vmatprep.subr.mxu0 0.0
        %634 = vmatpush1.msra.mxu0 %v471
        %635 = vmatprep.subr.mxu0 0.0
        %636 = vmatpush1.msra.mxu0 %v474
        %637 = vmatprep.subr.mxu0 0.0
        %638 = vmatpush1.msra.mxu0 %v477
        %639 = vmatprep.subr.mxu0 0.0
        %640 = vmatpush1.msra.mxu0 %v480
        %641 = vmatprep.subr.mxu0 0.0
        %642 = vmatpush1.msra.mxu0 %v483
        %643 = vmatprep.subr.mxu0 0.0
        %644 = vmatpush1.msra.mxu0 %v486
        %645 = vmatprep.subr.mxu0 0.0
        %646 = vmatpush1.msra.mxu0 %v489
        %647 = vmatprep.subr.mxu0 0.0
        %648 = vmatpush1.msra.mxu0 %v492
        %649 = vmatprep.subr.mxu0 0.0
        %650 = vmatpush1.msra.mxu0 %v495
        %651 = vmatprep.subr.mxu0 0.0
        %652 = vmatpush1.msra.mxu0 %v498
        %653 = vmatprep.subr.mxu0 0.0
        %654 = vmatpush1.msra.mxu0 %v501
        %655 = vmatprep.subr.mxu0 0.0
        %656 = vmatpush1.msra.mxu0 %v504
        %657 = vmatprep.subr.mxu0 0.0
        %658 = vmatpush1.msra.mxu0 %v507
        %659 = vmatprep.subr.mxu0 0.0
        %660 = vmatpush1.msra.mxu0 %v510
        %661 = vmatprep.subr.mxu0 0.0
        %662 = vmatpush1.msra.mxu0 %v513
        %663 = vmatprep.subr.mxu0 0.0
        %664 = vmatpush1.msra.mxu0 %v516
        %665 = vmatprep.subr.mxu0 0.0
        %666 = vmatpush1.msra.mxu0 %v519
        %667 = vmatprep.subr.mxu0 0.0
        %668 = vmatpush1.msra.mxu0 %v522
        %669 = vmatprep.subr.mxu0 0.0
        %670 = vmatpush1.msra.mxu0 %v525
        %671 = vmatprep.subr.mxu0 0.0
        %672 = vmatpush1.msra.mxu0 %v528
        %673 = vmatprep.subr.mxu0 0.0
        %674 = vmatpush1.msra.mxu0 %v531
        %675 = vmatprep.subr.mxu0 0.0
        %676 = vmatpush1.msra.mxu0 %v534
        %677 = vmatprep.subr.mxu0 0.0
        %678 = vmatpush1.msra.mxu0 %v537
        %679 = vmatprep.subr.mxu0 0.0
        %680 = vmatpush1.msra.mxu0 %v540
        %681 = vmatprep.subr.mxu0 0.0
        %682 = vmatpush1.msra.mxu0 %v543
        %683 = vmatprep.subr.mxu0 0.0
        %684 = vmatpush1.msra.mxu0 %v546
        %685 = vmatprep.subr.mxu0 0.0
        %686 = vmatpush1.msra.mxu0 %v549
        %687 = vmatprep.subr.mxu0 0.0
        %688 = vmatpush1.msra.mxu0 %v552
        %689 = vmatprep.subr.mxu0 0.0
        %690 = vmatpush1.msra.mxu0 %v555
        %691 = vmatprep.mubr.f32.mxu0 %v459
        %692 = vmatmul.mubr.f32.gmra.mrb[0].mxu0 %v458
        %v693 = vpop.f32.mrb[0].mxu0
        %v694 = vadd.f32 0.0, %v693
        %v695 = vpop.f32.mrb[0].mxu0
        %696 = vdwg.mxu0
        %v697 = vmax.f32 %v623, %v625
        %v698 = vmax.f32 %v697, %v694
        %699 = vrot.lane.b32.xlu0 %v698, 64
        %v700 = vpop.permute.xlu0 %699
        %v701 = vmax.f32 %v698, %v700
        %702 = vrot.lane.b32.xlu0 %v701, 96
        %v703 = vpop.permute.xlu0 %702
        %v704 = vmax.f32 %v701, %v703
        %v705 = vld [vmem:[%s389] sm:$0xff]
        %v706 = vld [vmem:[#allocation8] sm:$0xff]
        %v707 = vld [vmem:[#allocation8 + $0x8] sm:$0xff]
        %v708 = vld [vmem:[#allocation8 + $0x10] sm:$0xff]
        %v709 = vld [vmem:[#allocation8 + $0x18] sm:$0xff]
        %v710 = vld [vmem:[#allocation8 + $0x20] sm:$0xff]
        %v711 = vld [vmem:[#allocation8 + $0x28] sm:$0xff]
        %v712 = vld [vmem:[#allocation8 + $0x30] sm:$0xff]
        %v713 = vld [vmem:[#allocation8 + $0x38] sm:$0xff]
        %v714 = vld [vmem:[#allocation10] sm:$0xff]
        %v715 = vld [vmem:[#allocation10 + $0x8] sm:$0xff]
        %v716 = vld [vmem:[#allocation10 + $0x10] sm:$0xff]
        %v717 = vld [vmem:[#allocation10 + $0x18] sm:$0xff]
        %vm718 = vcmask 261120
        %v720 = vsel %vm718, %v704, 0
        %722 = vmatprep.subr.mxu0 0.0
        %723 = vmatpush1.msra.mxu0 %v714
        %724 = vmatprep.subr.mxu0 0.0
        %725 = vmatpush1.msra.mxu0 %v715
        %726 = vmatprep.subr.mxu0 0.0
        %727 = vmatpush1.msra.mxu0 %v716
        %728 = vmatprep.subr.mxu0 0.0
        %729 = vmatpush1.msra.mxu0 %v717
        %730 = vmatprep.subr.mxu0 0.0
        %731 = vmatpush1.msra.mxu0 0.0
        %732 = vmatprep.subr.mxu0 0.0
        %733 = vmatpush1.msra.mxu0 0.0
        %734 = vmatprep.subr.mxu0 0.0
        %735 = vmatpush1.msra.mxu0 0.0
        %736 = vmatprep.subr.mxu0 0.0
        %737 = vmatpush1.msra.mxu0 0.0
        %738 = vmatprep.subr.mxu0 0.0
        %739 = vmatpush1.msra.mxu0 0.0
        %740 = vmatprep.subr.mxu0 0.0
        %741 = vmatpush1.msra.mxu0 0.0
        %742 = vmatprep.subr.mxu0 0.0
        %743 = vmatpush1.msra.mxu0 0.0
        %744 = vmatprep.subr.mxu0 0.0
        %745 = vmatpush1.msra.mxu0 0.0
        %746 = vmatprep.subr.mxu0 0.0
        %747 = vmatpush1.msra.mxu0 0.0
        %748 = vmatprep.subr.mxu0 0.0
        %749 = vmatpush1.msra.mxu0 0.0
        %750 = vmatprep.subr.mxu0 0.0
        %751 = vmatpush1.msra.mxu0 0.0
        %752 = vmatprep.subr.mxu0 0.0
        %753 = vmatpush1.msra.mxu0 0.0
        %754 = vmatprep.subr.mxu0 0.0
        %755 = vmatpush1.msra.mxu0 0.0
        %756 = vmatprep.subr.mxu0 0.0
        %757 = vmatpush1.msra.mxu0 0.0
        %758 = vmatprep.subr.mxu0 0.0
        %759 = vmatpush1.msra.mxu0 0.0
        %760 = vmatprep.subr.mxu0 0.0
        %761 = vmatpush1.msra.mxu0 0.0
        %762 = vmatprep.subr.mxu0 0.0
        %763 = vmatpush1.msra.mxu0 0.0
        %764 = vmatprep.subr.mxu0 0.0
        %765 = vmatpush1.msra.mxu0 0.0
        %766 = vmatprep.subr.mxu0 0.0
        %767 = vmatpush1.msra.mxu0 0.0
        %768 = vmatprep.subr.mxu0 0.0
        %769 = vmatpush1.msra.mxu0 0.0
        %770 = vmatprep.subr.mxu0 0.0
        %771 = vmatpush1.msra.mxu0 0.0
        %772 = vmatprep.subr.mxu0 0.0
        %773 = vmatpush1.msra.mxu0 0.0
        %774 = vmatprep.subr.mxu0 0.0
        %775 = vmatpush1.msra.mxu0 0.0
        %776 = vmatprep.subr.mxu0 0.0
        %777 = vmatpush1.msra.mxu0 0.0
        %778 = vmatprep.subr.mxu0 0.0
        %779 = vmatpush1.msra.mxu0 0.0
        %780 = vmatprep.subr.mxu0 0.0
        %781 = vmatpush1.msra.mxu0 0.0
        %782 = vmatprep.subr.mxu0 0.0
        %783 = vmatpush1.msra.mxu0 0.0
        %784 = vmatprep.subr.mxu0 0.0
        %785 = vmatpush1.msra.mxu0 0.0
        %786 = vmatprep.mubr.f32.mxu0 0.0
        %787 = vmatmul.mubr.f32.gmra.mrb[0].mxu0 %v720
        %v788 = vpop.f32.mrb[0].mxu0
        %v789 = vadd.f32 0.0, %v788
        %v790 = vpop.f32.mrb[0].mxu0
        %791 = vdwg.mxu0
        %vm792 = vcmask 523264
        %v794 = vsel %vm792, %v705, 0
        %796 = vmatprep.subr.mxu0 0.0
        %797 = vmatpush1.msra.mxu0 %v706
        %798 = vmatprep.subr.mxu0 0.0
        %799 = vmatpush1.msra.mxu0 %v707
        %800 = vmatprep.subr.mxu0 0.0
        %801 = vmatpush1.msra.mxu0 %v708
        %802 = vmatprep.subr.mxu0 0.0
        %803 = vmatpush1.msra.mxu0 %v709
        %804 = vmatprep.subr.mxu0 0.0
        %805 = vmatpush1.msra.mxu0 %v710
        %806 = vmatprep.subr.mxu0 0.0
        %807 = vmatpush1.msra.mxu0 %v711
        %808 = vmatprep.subr.mxu0 0.0
        %809 = vmatpush1.msra.mxu0 %v712
        %810 = vmatprep.subr.mxu0 0.0
        %811 = vmatpush1.msra.mxu0 %v713
        %812 = vmatprep.subr.mxu0 0.0
        %813 = vmatpush1.msra.mxu0 0.0
        %814 = vmatprep.subr.mxu0 0.0
        %815 = vmatpush1.msra.mxu0 0.0
        %816 = vmatprep.subr.mxu0 0.0
        %817 = vmatpush1.msra.mxu0 0.0
        %818 = vmatprep.subr.mxu0 0.0
        %819 = vmatpush1.msra.mxu0 0.0
        %820 = vmatprep.subr.mxu0 0.0
        %821 = vmatpush1.msra.mxu0 0.0
        %822 = vmatprep.subr.mxu0 0.0
        %823 = vmatpush1.msra.mxu0 0.0
        %824 = vmatprep.subr.mxu0 0.0
        %825 = vmatpush1.msra.mxu0 0.0
        %826 = vmatprep.subr.mxu0 0.0
        %827 = vmatpush1.msra.mxu0 0.0
        %828 = vmatprep.subr.mxu0 0.0
        %829 = vmatpush1.msra.mxu0 0.0
        %830 = vmatprep.subr.mxu0 0.0
        %831 = vmatpush1.msra.mxu0 0.0
        %832 = vmatprep.subr.mxu0 0.0
        %833 = vmatpush1.msra.mxu0 0.0
        %834 = vmatprep.subr.mxu0 0.0
        %835 = vmatpush1.msra.mxu0 0.0
        %836 = vmatprep.subr.mxu0 0.0
        %837 = vmatpush1.msra.mxu0 0.0
        %838 = vmatprep.subr.mxu0 0.0
        %839 = vmatpush1.msra.mxu0 0.0
        %840 = vmatprep.subr.mxu0 0.0
        %841 = vmatpush1.msra.mxu0 0.0
        %842 = vmatprep.subr.mxu0 0.0
        %843 = vmatpush1.msra.mxu0 0.0
        %844 = vmatprep.subr.mxu0 0.0
        %845 = vmatpush1.msra.mxu0 0.0
        %846 = vmatprep.subr.mxu0 0.0
        %847 = vmatpush1.msra.mxu0 0.0
        %848 = vmatprep.subr.mxu0 0.0
        %849 = vmatpush1.msra.mxu0 0.0
        %850 = vmatprep.subr.mxu0 0.0
        %851 = vmatpush1.msra.mxu0 0.0
        %852 = vmatprep.subr.mxu0 0.0
        %853 = vmatpush1.msra.mxu0 0.0
        %854 = vmatprep.subr.mxu0 0.0
        %855 = vmatpush1.msra.mxu0 0.0
        %856 = vmatprep.subr.mxu0 0.0
        %857 = vmatpush1.msra.mxu0 0.0
        %858 = vmatprep.subr.mxu0 0.0
        %859 = vmatpush1.msra.mxu0 0.0
        %860 = vmatprep.mubr.f32.mxu0 0.0
        %861 = vmatmul.mubr.f32.gmra.mrb[0].mxu0 %v794
        %v862 = vpop.f32.mrb[0].mxu0
        %v863 = vadd.f32 %v789, %v862
        %v864 = vpop.f32.mrb[0].mxu0
        %865 = vdwg.mxu0
        %v866 = vld [vmem:[%s5] sm:$0x1]
        %v868 = vlaneseq
        %v869 = vshrl.u32 %v868, 7
        %v870 = vsub.s32 0, %v869
        %v871 = vrot.slane %v866, %v870
        %v873 = vadd.f32 %v863, %v871
        %v874 = vld [vmem:[#allocation11] sm:$0xff]
        %v875 = vld [vmem:[#allocation11 + $0x8] sm:$0xff]
        %v876 = vld [vmem:[#allocation11 + $0x10] sm:$0xff]
        %v877 = vld [vmem:[#allocation11 + $0x18] sm:$0xff]
        %v878 = vld [vmem:[#allocation11 + $0x20] sm:$0xff]
        %v879 = vld [vmem:[#allocation11 + $0x28] sm:$0xff]
        %v880 = vld [vmem:[#allocation11 + $0x30] sm:$0xff]
        %v881 = vld [vmem:[#allocation11 + $0x38] sm:$0xff]
        %v882 = vld [vmem:[%s8] sm:$0x1]
        %v883 = vlaneseq
        %v884 = vshrl.u32 %v883, 7
        %v885 = vsub.s32 0, %v884
        %v886 = vrot.slane %v882, %v885
        %v888 = vsel %vm792, %v873, 0
        %890 = vmatprep.subr.mxu0 0.0
        %891 = vmatpush1.msra.mxu0 %v874
        %892 = vmatprep.subr.mxu0 0.0
        %893 = vmatpush1.msra.mxu0 %v875
        %894 = vmatprep.subr.mxu0 0.0
        %895 = vmatpush1.msra.mxu0 %v876
        %896 = vmatprep.subr.mxu0 0.0
        %897 = vmatpush1.msra.mxu0 %v877
        %898 = vmatprep.subr.mxu0 0.0
        %899 = vmatpush1.msra.mxu0 %v878
        %900 = vmatprep.subr.mxu0 0.0
        %901 = vmatpush1.msra.mxu0 %v879
        %902 = vmatprep.subr.mxu0 0.0
        %903 = vmatpush1.msra.mxu0 %v880
        %904 = vmatprep.subr.mxu0 0.0
        %905 = vmatpush1.msra.mxu0 %v881
        %906 = vmatprep.subr.mxu0 0.0
        %907 = vmatpush1.msra.mxu0 0.0
        %908 = vmatprep.subr.mxu0 0.0
        %909 = vmatpush1.msra.mxu0 0.0
        %910 = vmatprep.subr.mxu0 0.0
        %911 = vmatpush1.msra.mxu0 0.0
        %912 = vmatprep.subr.mxu0 0.0
        %913 = vmatpush1.msra.mxu0 0.0
        %914 = vmatprep.subr.mxu0 0.0
        %915 = vmatpush1.msra.mxu0 0.0
        %916 = vmatprep.subr.mxu0 0.0
        %917 = vmatpush1.msra.mxu0 0.0
        %918 = vmatprep.subr.mxu0 0.0
        %919 = vmatpush1.msra.mxu0 0.0
        %920 = vmatprep.subr.mxu0 0.0
        %921 = vmatpush1.msra.mxu0 0.0
        %922 = vmatprep.subr.mxu0 0.0
        %923 = vmatpush1.msra.mxu0 0.0
        %924 = vmatprep.subr.mxu0 0.0
        %925 = vmatpush1.msra.mxu0 0.0
        %926 = vmatprep.subr.mxu0 0.0
        %927 = vmatpush1.msra.mxu0 0.0
        %928 = vmatprep.subr.mxu0 0.0
        %929 = vmatpush1.msra.mxu0 0.0
        %930 = vmatprep.subr.mxu0 0.0
        %931 = vmatpush1.msra.mxu0 0.0
        %932 = vmatprep.subr.mxu0 0.0
        %933 = vmatpush1.msra.mxu0 0.0
        %934 = vmatprep.subr.mxu0 0.0
        %935 = vmatpush1.msra.mxu0 0.0
        %936 = vmatprep.subr.mxu0 0.0
        %937 = vmatpush1.msra.mxu0 0.0
        %938 = vmatprep.subr.mxu0 0.0
        %939 = vmatpush1.msra.mxu0 0.0
        %940 = vmatprep.subr.mxu0 0.0
        %941 = vmatpush1.msra.mxu0 0.0
        %942 = vmatprep.subr.mxu0 0.0
        %943 = vmatpush1.msra.mxu0 0.0
        %944 = vmatprep.subr.mxu0 0.0
        %945 = vmatpush1.msra.mxu0 0.0
        %946 = vmatprep.subr.mxu0 0.0
        %947 = vmatpush1.msra.mxu0 0.0
        %948 = vmatprep.subr.mxu0 0.0
        %949 = vmatpush1.msra.mxu0 0.0
        %950 = vmatprep.subr.mxu0 0.0
        %951 = vmatpush1.msra.mxu0 0.0
        %952 = vmatprep.subr.mxu0 0.0
        %953 = vmatpush1.msra.mxu0 0.0
        %954 = vmatprep.mubr.f32.mxu0 0.0
        %955 = vmatmul.mubr.f32.gmra.mrb[0].mxu0 %v888
        %v956 = vpop.f32.mrb[0].mxu0
        %v957 = vadd.f32 %v886, %v956
        %v958 = vpop.f32.mrb[0].mxu0
        %959 = vdwg.mxu0
        %v960 = vxor.u32 %v957, 2147483648
        %v961 = vmul.f32 %v960, 1.442695
        %v962 = vpow.pop %v961
        %v963 = vadd.f32 %v962, 1.0
        %v964 = vrcp.pop %v963
        %v965 = vmul.f32 1.0, %v964
        %v966 = vmax.f32 %v957, 0.0
        %968 = vrot.lane.b32.xlu0 %v966, 64
        %v969 = vpop.permute.xlu0 %968
        %v971 = vmul.f32 %v965, %v969
        %v972 = vsub.f32 1.0, %v965
        %v973 = vmul.f32 %v972, %v873
        %v974 = vadd.f32 %v971, %v973
        %v975 = vld [vmem:[#allocation13] sm:$0xff]
        %v976 = vld [vmem:[#allocation13 + $0x8] sm:$0xff]
        %v977 = vld [vmem:[#allocation13 + $0x10] sm:$0xff]
        %v978 = vld [vmem:[#allocation13 + $0x18] sm:$0xff]
        %v979 = vld [vmem:[#allocation13 + $0x20] sm:$0xff]
        %v980 = vld [vmem:[#allocation13 + $0x28] sm:$0xff]
        %v981 = vld [vmem:[#allocation13 + $0x30] sm:$0xff]
        %v982 = vld [vmem:[#allocation13 + $0x38] sm:$0xff]
        %v983 = vld [vmem:[%s8 + $0x1] sm:$0x1]
        %v984 = vlaneseq
        %v985 = vshrl.u32 %v984, 7
        %v986 = vsub.s32 0, %v985
        %v987 = vrot.slane %v983, %v986
        %v989 = vsel %vm792, %v974, 0
        %991 = vmatprep.subr.mxu0 0.0
        %992 = vmatpush1.msra.mxu0 %v975
        %993 = vmatprep.subr.mxu0 0.0
        %994 = vmatpush1.msra.mxu0 %v976
        %995 = vmatprep.subr.mxu0 0.0
        %996 = vmatpush1.msra.mxu0 %v977
        %997 = vmatprep.subr.mxu0 0.0
        %998 = vmatpush1.msra.mxu0 %v978
        %999 = vmatprep.subr.mxu0 0.0
        %1000 = vmatpush1.msra.mxu0 %v979
        %1001 = vmatprep.subr.mxu0 0.0
        %1002 = vmatpush1.msra.mxu0 %v980
        %1003 = vmatprep.subr.mxu0 0.0
        %1004 = vmatpush1.msra.mxu0 %v981
        %1005 = vmatprep.subr.mxu0 0.0
        %1006 = vmatpush1.msra.mxu0 %v982
        %1007 = vmatprep.subr.mxu0 0.0
        %1008 = vmatpush1.msra.mxu0 0.0
        %1009 = vmatprep.subr.mxu0 0.0
        %1010 = vmatpush1.msra.mxu0 0.0
        %1011 = vmatprep.subr.mxu0 0.0
        %1012 = vmatpush1.msra.mxu0 0.0
        %1013 = vmatprep.subr.mxu0 0.0
        %1014 = vmatpush1.msra.mxu0 0.0
        %1015 = vmatprep.subr.mxu0 0.0
        %1016 = vmatpush1.msra.mxu0 0.0
        %1017 = vmatprep.subr.mxu0 0.0
        %1018 = vmatpush1.msra.mxu0 0.0
        %1019 = vmatprep.subr.mxu0 0.0
        %1020 = vmatpush1.msra.mxu0 0.0
        %1021 = vmatprep.subr.mxu0 0.0
        %1022 = vmatpush1.msra.mxu0 0.0
        %1023 = vmatprep.subr.mxu0 0.0
        %1024 = vmatpush1.msra.mxu0 0.0
        %1025 = vmatprep.subr.mxu0 0.0
        %1026 = vmatpush1.msra.mxu0 0.0
        %1027 = vmatprep.subr.mxu0 0.0
        %1028 = vmatpush1.msra.mxu0 0.0
        %1029 = vmatprep.subr.mxu0 0.0
        %1030 = vmatpush1.msra.mxu0 0.0
        %1031 = vmatprep.subr.mxu0 0.0
        %1032 = vmatpush1.msra.mxu0 0.0
        %1033 = vmatprep.subr.mxu0 0.0
        %1034 = vmatpush1.msra.mxu0 0.0
        %1035 = vmatprep.subr.mxu0 0.0
        %1036 = vmatpush1.msra.mxu0 0.0
        %1037 = vmatprep.subr.mxu0 0.0
        %1038 = vmatpush1.msra.mxu0 0.0
        %1039 = vmatprep.subr.mxu0 0.0
        %1040 = vmatpush1.msra.mxu0 0.0
        %1041 = vmatprep.subr.mxu0 0.0
        %1042 = vmatpush1.msra.mxu0 0.0
        %1043 = vmatprep.subr.mxu0 0.0
        %1044 = vmatpush1.msra.mxu0 0.0
        %1045 = vmatprep.subr.mxu0 0.0
        %1046 = vmatpush1.msra.mxu0 0.0
        %1047 = vmatprep.subr.mxu0 0.0
        %1048 = vmatpush1.msra.mxu0 0.0
        %1049 = vmatprep.subr.mxu0 0.0
        %1050 = vmatpush1.msra.mxu0 0.0
        %1051 = vmatprep.subr.mxu0 0.0
        %1052 = vmatpush1.msra.mxu0 0.0
        %1053 = vmatprep.subr.mxu0 0.0
        %1054 = vmatpush1.msra.mxu0 0.0
        %1055 = vmatprep.mubr.f32.mxu0 0.0
        %1056 = vmatmul.mubr.f32.gmra.mrb[0].mxu0 %v989
        %v1057 = vpop.f32.mrb[0].mxu0
        %v1058 = vadd.f32 %v987, %v1057
        %v1059 = vpop.f32.mrb[0].mxu0
        %1060 = vdwg.mxu0
        %v1061 = vxor.u32 %v1058, 2147483648
        %v1062 = vmul.f32 %v1061, 1.442695
        %v1063 = vpow.pop %v1062
        %v1064 = vadd.f32 %v1063, 1.0
        %v1065 = vrcp.pop %v1064
        %v1066 = vmul.f32 1.0, %v1065
        %v1067 = vmax.f32 %v1058, 0.0
        %1069 = vrot.lane.b32.xlu0 %v1067, 64
        %v1070 = vpop.permute.xlu0 %1069
        %v1072 = vmul.f32 %v1066, %v1070
        %v1073 = vsub.f32 1.0, %v1066
        %v1074 = vmul.f32 %v1073, %v974
        %v1075 = vadd.f32 %v1072, %v1074
        %1076 = vst.msk [vmem:[%s457] sm:$0xff] %vm792, %v1075
        %s1077 = sand.u32 %s238, 1
        %s1078 = scalar_lea.sflag [#allocation4], %s1077
        %s1079 = sand.u32 %s238, 1
        %s1080 = smul.addr %s1079, 8
        %s1081 = scalar_lea.vmem [#allocation14], %s1080
        // Predicated region
        $region85: #{tpu_custom_call.1} parent=55 // pred_check
          %p1082 = pneg %p248
        $region86: #{tpu_custom_call.1} parent=55 // pred_check_branch
          %1084 = sbr.rel (%p1082) target = $region88
        $region87: #{tpu_custom_call.1} parent=55 // pred_region
          %s1086 = ssub.s32 128, 128
          %1087 = vsyncadd %s1078, %s1086
          %s1088 = smul.addr %s31, 128
          %s1089 = scalar_lea.hbm %s9, %s1088
          %s1091 = sshll.u32 %s1081, 4
          %s1092 = int_to_ptr.vmem [resolvable:$true] %s1091
          %1094 = dma.vmem_to_hbm [thread:$0]  %s1092, 128, %s1089, %s1078
        $region88: #{tpu_custom_call.1} parent=55 // pred_fallthru
          _
      $region56: #{tpu_custom_call.1} parent=5 // pred_fallthru
        _
      %p1095 = scmp.le.s32.totalorder 2, %s26
      // Predicated region
      $region89: #{tpu_custom_call.1} parent=5 // pred_check
        %p1096 = pneg %p1095
      $region90: #{tpu_custom_call.1} parent=5 // pred_check_branch
        %1098 = sbr.rel (%p1096) target = $region92
      $region91: #{tpu_custom_call.1} parent=5 // pred_region
        %s1099 = ssub.s32 %s26, 2
        // Predicated region
        $region93: #{tpu_custom_call.1} parent=91 // pred_check
          %p1100 = pneg %p254
        $region94: #{tpu_custom_call.1} parent=91 // pred_check_branch
          %1102 = sbr.rel (%p1100) target = $region96
        $region95: #{tpu_custom_call.1} parent=91 // pred_region
          %s1103 = sand.u32 %s239, 1
          %s1104 = scalar_lea.sflag [#allocation4], %s1103
          %s1105 = sand.u32 %s239, 1
          %s1106 = smul.addr %s1105, 8
          %s1107 = scalar_lea.vmem [#allocation14], %s1106
          %1108 = dma.done %s1104, 128
        $region96: #{tpu_custom_call.1} parent=91 // pred_fallthru
          _
      $region92: #{tpu_custom_call.1} parent=5 // pred_fallthru
        _
    $region6: #{tpu_custom_call.1} parent=1 // loop_footer
      %s30 = sadd.s32 1, %s26
    $region7: #{tpu_custom_call.1} parent=1 // loop_footer_branch
      %25 = sbr.rel target = $region3
    $region8: #{tpu_custom_call.1} parent=1 // loop_exit
      _
    %1109 = vsyncpa [#allocation3], 1
    %s1110 = scalar_lea.sflag [#allocation3], 1
    %1111 = vsyncpa %s1110, 1
    %1112 = vsyncpa [#allocation6], 1
    %s1113 = scalar_lea.sflag [#allocation6], 1
    %1114 = vsyncpa %s1113, 1
    %1115 = vsyncpa [#allocation9], 1
    %1116 = vsyncpa [#allocation12], 1
    %1117 = vsyncpa [#allocation4], 1
    %s1118 = scalar_lea.sflag [#allocation4], 1
    %1119 = vsyncpa %s1118, 1

</llo_original>
